<compile_context>
chip_gen: v5e
topology: v5e:2x2
jax: 0.10.0
libtpu: 0.0.40
codegen_flags: <defaults>
</compile_context>

<pallas_src>
import numpy as np
import jax
import jax.numpy as jnp
from jax.experimental import pallas as pl
from jax.experimental.pallas import tpu as pltpu


_LANE = 128            # TPU lane width
_SUBLANE = 8           # f32 sublane count; packed dtypes use multiples of this
_MIB = 1024 * 1024


def _round_up(a, b):
    return ((a + b - 1) // b) * b


def _round_down(a, b):
    return (a // b) * b


def _generation_params():
    """(target_block_bytes, vmem_limit_bytes) chosen per TPU generation.

    v5e / v6e : 128 MiB physical VMEM -> 8 MiB blocks, 64 MiB scoped limit.
    v7x       :  64 MiB physical VMEM -> 4 MiB blocks, 32 MiB scoped limit.
    Falls back to the conservative (4 MiB, 32 MiB) if the query fails.
    With double-buffered in+out blocks this stays well under the limit even
    for widening fns (4 * block_bytes <= limit/2 on every generation).
    """
    vmem = None
    try:
        info = pltpu.get_tpu_info()
        vmem = int(getattr(info, "vmem_capacity_bytes"))
    except Exception:
        vmem = None
    if vmem is not None and vmem >= 96 * _MIB:
        return 8 * _MIB, 64 * _MIB
    return 4 * _MIB, 32 * _MIB


def _plan_layout(total, in_item, out_item, target_block_bytes):
    """Pick (lane_width, rows, row_tile, padded_total, grid_rows) for a flat
    stream of `total` elements.

    - lane_width is a multiple of 128 (lane-dense, unmasked vst), chosen to
      divide `total` when possible so no pad/slice is needed at all.
    - rows are NOT padded to the row tile: the grid uses cdiv and the ragged
      last block is clipped by Pallas' writeback.
    - row_tile is a multiple of the packed-sublane count of the narrowest
      dtype touched, sized from the generation-aware block budget with the
      *widest* dtype's itemsize.
    """
    min_item = min(in_item, out_item)
    max_item = max(in_item, out_item)
    # Packed sublane multiple: f32 -> 8, bf16/f16 -> 16, int8/fp8 -> 32.
    sublane_mult = max(_SUBLANE, (_SUBLANE * 4) // max(1, min_item))

    if total % _LANE == 0:
        padded_total = total
        lane_width = _LANE
        for mult in (8, 4, 2, 1):          # prefer wider lanes (up to 1024)
            lw = _LANE * mult
            if total % lw == 0 and total // lw >= sublane_mult:
                lane_width = lw
                break
    else:
        # Awkward size: pad the flat stream by < 128 elements only.
        padded_total = _round_up(total, _LANE)
        lane_width = _LANE

    rows = padded_total // lane_width
    target_rows = max(1, target_block_bytes // (lane_width * max_item))
    target_rows = max(sublane_mult, _round_down(target_rows, sublane_mult))

    if rows <= target_rows:
        # Whole stream is one block; block dim == full array dim (always legal,
        # even when rows is not a sublane multiple).
        row_tile = rows
        grid_rows = 1
    else:
        row_tile = target_rows
        grid_rows = pl.cdiv(rows, row_tile)   # ragged last block handled by Pallas
    return lane_width, rows, row_tile, padded_total, grid_rows


def _make_kernel(elementwise_fn):
    def kernel(x_ref, o_ref):
        o_ref[...] = elementwise_fn(x_ref[...]).astype(o_ref.dtype)
    return kernel


def _apply_elementwise_pallas(elementwise_fn, y, *, force_pallas=False,
                              small_fast_path_bytes=1 * _MIB):
    """Apply a pointwise fn to `y` via a single mem-bound streaming Pallas kernel."""
    total = int(y.size)
    in_item = np.dtype(y.dtype).itemsize
    out_dtype = jax.eval_shape(
        elementwise_fn, jax.ShapeDtypeStruct(y.shape, y.dtype)).dtype
    out_item = np.dtype(out_dtype).itemsize

    # Small-tensor fast path: the fixed pallas_call launch + glue dominates tiny
    # streams; XLA's fused elementwise already sits at the HBM roofline.
    if (not force_pallas) and total * max(in_item, out_item) <= small_fast_path_bytes:
        return elementwise_fn(y)

    target_block_bytes, vmem_limit_bytes = _generation_params()
    lane_width, rows, row_tile, padded_total, grid_rows = _plan_layout(
        total, in_item, out_item, target_block_bytes)

    flat = y.reshape(-1)
    if padded_total != total:
        # < 128 pad elements; allow_input_fusion lets XLA fuse this into the
        # kernel's input DMA instead of materializing an extra HBM pass.
        flat = jnp.pad(flat, (0, padded_total - total))
    slab = flat.reshape(rows, lane_width)

    # Honest mem-bound cost estimate from the actual fn, un-padded byte counts.
    try:
        est = pl.estimate_cost(
            elementwise_fn, jax.ShapeDtypeStruct(y.shape, y.dtype))
        flops, transcendentals = int(est.flops), int(est.transcendentals)
    except Exception:
        flops, transcendentals = total, 0
    cost = pl.CostEstimate(
        flops=flops,
        transcendentals=transcendentals,
        bytes_accessed=total * in_item + total * out_item,
    )

    # No input_output_aliases: Lambda does not consume its input (the caller's
    # buffer stays live), so aliasing without donation would only force XLA to
    # insert a defensive copy.
    out_slab = pl.pallas_call(
        _make_kernel(elementwise_fn),
        out_shape=jax.ShapeDtypeStruct((rows, lane_width), out_dtype),
        grid=(grid_rows,),
        in_specs=[pl.BlockSpec((row_tile, lane_width), lambda i: (i, 0))],
        out_specs=pl.BlockSpec((row_tile, lane_width), lambda i: (i, 0)),
        compiler_params=pltpu.CompilerParams(
            # TODO(synk): on v7x, shard the row axis across both TensorCores
            # with pltpu.CORE_PARALLEL (plain "parallel" does not split TCs);
            # kept "parallel" here for guaranteed-clean lowering on all gens.
            dimension_semantics=("parallel",),
            vmem_limit_bytes=vmem_limit_bytes,
            allow_input_fusion=[0],
        ),
        cost_estimate=cost,
    )(slab)

    out_flat = out_slab.reshape(-1)
    if padded_total != total:
        out_flat = out_flat[:total]   # only on the awkward (<128-elem pad) path
    return out_flat.reshape(y.shape)


class PallasLambda:
    """JAX/Pallas equivalent of the PyTorch `Lambda(func)` module.

    `func` is decomposed into:
      shape_fn       : pure-metadata part (view/reshape) -> zero-cost JAX glue,
                       NO kernel is launched for it.
      elementwise_fn : data-touching pointwise part      -> Pallas streaming kernel.
    """

    # TODO(synk): arbitrary user-supplied `func` that is not (reshape o pointwise)
    # (e.g. reductions, cross-element ops) has no generic Pallas lowering here.

    def __init__(self, elementwise_fn=None, shape_fn=lambda x: x, *,
                 force_pallas=False, small_fast_path_bytes=1 * _MIB):
        self.elementwise_fn = elementwise_fn
        self.shape_fn = shape_fn
        if elementwise_fn is not None:
            self._elementwise_call = jax.jit(
                lambda y: _apply_elementwise_pallas(
                    elementwise_fn, y,
                    force_pallas=force_pallas,
                    small_fast_path_bytes=small_fast_path_bytes,
                )
            )
        else:
            self._elementwise_call = None

    def __call__(self, x):
        # Metadata-only part (torch .view analogue): free, never a kernel.
        y = self.shape_fn(x)
        if self._elementwise_call is None:
            # Identity data path (canonical Lambda(view)): short-circuit entirely.
            return y
        return self._elementwise_call(y)


if __name__ == "__main__":
    key = jax.random.PRNGKey(0)
    x = jax.random.normal(key, (2, 4, 16, 16), dtype=jnp.float32)  # NCHW

    # Case 1: canonical Lambda(lambda x: x.view(x.size(0), -1)) — pure view,
    # no kernel is launched (reshape is metadata-only).
    flatten_lambda = PallasLambda(shape_fn=lambda v: v.reshape(v.shape[0], -1))
    out_view = jax.block_until_ready(flatten_lambda(x))
    ref_view = x.reshape(x.shape[0], -1)
    assert out_view.shape == (2, 4 * 16 * 16), out_view.shape
    assert out_view.dtype == x.dtype
    assert bool(jnp.array_equal(out_view, ref_view)), "view Lambda mismatch"

    pw = lambda v: jnp.maximum(v, 0.0) * 2.0 + 1.0

    # Case 2: pointwise func, Pallas kernel forced even at this small size
    # (no pad / no slice path: 2048 elems divides 128, lane-dense slab).
    pointwise_lambda = PallasLambda(elementwise_fn=pw, force_pallas=True)
    out_pw = jax.block_until_ready(pointwise_lambda(x))
    ref_pw = pw(x)
    assert out_pw.shape == x.shape and out_pw.dtype == x.dtype
    assert jnp.allclose(out_pw, ref_pw, atol=1e-6), "pointwise Lambda mismatch"

    # Case 3: view + pointwise on an awkward (non-128-multiple) size —
    # exercises the <128-element pad + fused-input path.
    x2 = jax.random.normal(jax.random.PRNGKey(0), (3, 7, 11), dtype=jnp.float32)
    combo_lambda = PallasLambda(
        elementwise_fn=pw, shape_fn=lambda v: v.reshape(v.shape[0], -1),
        force_pallas=True)
    out_c = jax.block_until_ready(combo_lambda(x2))
    ref_c = pw(x2.reshape(3, -1))
    assert out_c.shape == ref_c.shape and jnp.allclose(out_c, ref_c, atol=1e-6)

    # Case 4: bf16 input — exercises dtype-aware packed-sublane planning (16-row
    # multiples) so stores stay unmasked.
    xb = jax.random.normal(jax.random.PRNGKey(0), (4, 16, 32), dtype=jnp.bfloat16)
    bf16_lambda = PallasLambda(elementwise_fn=pw, force_pallas=True)
    out_b = jax.block_until_ready(bf16_lambda(xb))
    ref_b = pw(xb)
    assert out_b.shape == xb.shape and out_b.dtype == xb.dtype
    assert jnp.allclose(out_b.astype(jnp.float32), ref_b.astype(jnp.float32),
                        atol=1e-2, rtol=1e-2), "bf16 pointwise Lambda mismatch"

    # Case 5: default config on a small tensor — small-tensor fast path
    # (no pallas_call launched, plain fused XLA elementwise).
    fast_lambda = PallasLambda(elementwise_fn=pw)
    out_f = jax.block_until_ready(fast_lambda(x))
    assert jnp.allclose(out_f, ref_pw, atol=1e-6), "fast-path Lambda mismatch"

    print("KERNEL_OK")
</pallas_src>

<mosaic_0001>
module attributes {stable_mosaic.version = 11 : i64} {
  func.func @kernel(%arg0: i32, %arg1: memref<8x256xf32, #tpu.memory_space<vmem>>, %arg2: memref<8x256xf32, #tpu.memory_space<vmem>>) attributes {dimension_semantics = [#tpu.dimension_semantics<parallel>], iteration_bounds = array<i64: 1>, scalar_prefetch = 0 : i64, scratch_operands = 0 : i64, tpu.core_type = #tpu.core_type<tc>, window_params = [{transform_indices = @transform_0, window_bounds = array<i64: 8, 256>}, {transform_indices = @transform_1, window_bounds = array<i64: 8, 256>}]} {
    %c0 = arith.constant 0 : index
    %c0_0 = arith.constant 0 : index
    %0 = vector.load %arg1[%c0, %c0_0] : memref<8x256xf32, #tpu.memory_space<vmem>>, vector<8x256xf32>
    %cst = arith.constant 0.000000e+00 : f32
    %1 = vector.broadcast %cst : f32 to vector<8x256xf32>
    %2 = arith.maximumf %0, %1 : vector<8x256xf32>
    %cst_1 = arith.constant 2.000000e+00 : f32
    %3 = vector.broadcast %cst_1 : f32 to vector<8x256xf32>
    %4 = arith.mulf %2, %3 : vector<8x256xf32>
    %cst_2 = arith.constant 1.000000e+00 : f32
    %5 = vector.broadcast %cst_2 : f32 to vector<8x256xf32>
    %6 = arith.addf %4, %5 : vector<8x256xf32>
    %c0_3 = arith.constant 0 : index
    %c0_4 = arith.constant 0 : index
    %7 = vector.load %arg2[%c0_3, %c0_4] : memref<8x256xf32, #tpu.memory_space<vmem>>, vector<8x256xf32>
    tpu.vector_store %arg2[%c0_3, %c0_4], %6 {strides = array<i32>} : memref<8x256xf32, #tpu.memory_space<vmem>>, vector<8x256xf32>,
    return
  }
  func.func @transform_0(%arg0: i32) -> (i32, i32) {
    %c0_i32 = arith.constant 0 : i32
    %c0_i32_0 = arith.constant 0 : i32
    return %arg0, %c0_i32 : i32, i32
  }
  func.func @transform_1(%arg0: i32) -> (i32, i32) {
    %c0_i32 = arith.constant 0 : i32
    %c0_i32_0 = arith.constant 0 : i32
    return %arg0, %c0_i32 : i32, i32
  }
}

</mosaic_0001>

<llo_original>
// kernel: _lambda_.1
$region0: #{_lambda_.1}
  #allocation0 [shape = 'u32[]', space=smem, size = 0x4, offset = 0x4, fixed_abs, tag = 'smem constant byte address 0x4 - core index']
  #allocation1 [shape = 'u32[72,128]{1,0:T(1,128)}', space=vmem, size = 0x9000, scoped, tag = 'internal scratch']
  %s0 = inlined_call_operand.vmem [shape: f32[8,256], index: 0, kind: input, shape index: {}]
  %s1 = inlined_call_operand.vmem [shape: f32[8,256], index: 1, kind: output, shape index: {}]
  %s2 = sld [smem:[#allocation0]]
  $region14: #{_lambda_.1} parent=0
    _
  %s4 = ssub.s32 1, %s2
  %s5 = scalar_select 0, %s4, %s2
  // Predicated region
  $region2: #{_lambda_.1} parent=0 // pred_check
    _
  $region3: #{_lambda_.1} parent=0 // pred_check_branch
    %7 = sbr.rel (0) target = $region5
  $region4: #{_lambda_.1} parent=0 // pred_region
    _
  $region5: #{_lambda_.1} parent=0 // pred_fallthru
    _
  %v8 = vld [vmem:[%s0] sm:$0xff]
  %v9 = vld [vmem:[%s0 + $0x8] sm:$0xff]
  %v10 = vmax.f32 %v8, 0.0
  %v11 = vmax.f32 %v9, 0.0
  %v12 = vmul.f32 %v10, 2.0
  %v13 = vmul.f32 %v11, 2.0
  %v14 = vadd.f32 %v12, 1.0
  %v15 = vadd.f32 %v13, 1.0
  %16 = vst [vmem:[%s1] sm:$0xff] %v14
  %17 = vst [vmem:[%s1 + $0x8] sm:$0xff] %v15
  // Predicated region
  $region6: #{_lambda_.1} parent=0 // pred_check
    _
  $region7: #{_lambda_.1} parent=0 // pred_check_branch
    %19 = sbr.rel (0) target = $region9
  $region8: #{_lambda_.1} parent=0 // pred_region
    _
  $region9: #{_lambda_.1} parent=0 // pred_fallthru
    _
  // Predicated region
  $region10: #{_lambda_.1} parent=0 // pred_check
    _
  $region11: #{_lambda_.1} parent=0 // pred_check_branch
    %21 = sbr.rel (0) target = $region13
  $region12: #{_lambda_.1} parent=0 // pred_region
    _
  $region13: #{_lambda_.1} parent=0 // pred_fallthru
    _

</llo_original>
